<compile_context>
chip_gen: v6e
topology: v6e:2x2x1
jax: 0.10.0
libtpu: 0.0.40
codegen_flags: <defaults>
</compile_context>

<pallas_src>
import jax
import jax.numpy as jnp
from jax.experimental import pallas as pl
from jax.experimental.pallas import tpu as pltpu

EPS = 1e-9
LN2 = 0.6931471805599453


def _eta(x):
    # TODO(synk): `eta` is not defined in the reference source; using the
    # standard TFN shifted softplus eta(x) = softplus(x) - log(2), computed in
    # the numerically stable form max(x,0) + log1p(exp(-|x|)) - ln 2.
    return jnp.maximum(x, 0.0) + jnp.log1p(jnp.exp(-jnp.abs(x))) - LN2


def _round_up(x, m):
    return ((x + m - 1) // m) * m


def _choose_block_a(A, C, itemsize):
    """Atom-block size: multiple of 8, few-MiB working set, >=2 grid steps."""
    a_pad = _round_up(A, 8)
    # in + out, 9 vector components total, double-buffered.
    per_atom_bytes = 2 * 2 * 9 * C * itemsize
    target_bytes = 4 * 1024 * 1024
    ba = max(8, (target_bytes // per_atom_bytes) // 8 * 8)
    ba = min(ba, 1024, a_pad)
    # If one block would cover everything but A is big enough to split, halve
    # it so dimension_semantics=("parallel",) actually feeds both v7x TCs.
    if a_pad >= 16 and ba >= a_pad:
        ba = max(8, _round_up(pl.cdiv(a_pad, 2), 8))
    return ba


def nonlinearity_kernel(v0_ref, v1_ref, v2_ref, b1_ref, b2_ref,
                        o0_ref, o1_ref, o2_ref):
    f32 = jnp.float32

    # Partial edge blocks may contain stale rows; sqrt/eta on them is finite
    # (squares are >= 0, eta is overflow-safe) and those rows are never
    # written back to valid output regions.

    # l = 0: plain elementwise eta on a lane-dense (TA, C) tile.
    o0_ref[...] = _eta(v0_ref[...].astype(f32)).astype(o0_ref.dtype)

    # l = 1: three lane-dense (TA, C) slices; unrolled sum of squares.
    x0 = v1_ref[0].astype(f32)
    x1 = v1_ref[1].astype(f32)
    x2 = v1_ref[2].astype(f32)
    n1 = jnp.sqrt(x0 * x0 + x1 * x1 + x2 * x2 + EPS)              # (TA, C)
    g1 = _eta(n1 + b1_ref[...].astype(f32))                        # (1,C) bcast
    o1_ref[0] = (x0 * g1).astype(o1_ref.dtype)
    o1_ref[1] = (x1 * g1).astype(o1_ref.dtype)
    o1_ref[2] = (x2 * g1).astype(o1_ref.dtype)

    # l = 2: five lane-dense (TA, C) slices.
    y0 = v2_ref[0].astype(f32)
    y1 = v2_ref[1].astype(f32)
    y2 = v2_ref[2].astype(f32)
    y3 = v2_ref[3].astype(f32)
    y4 = v2_ref[4].astype(f32)
    n2 = jnp.sqrt(y0 * y0 + y1 * y1 + y2 * y2 + y3 * y3 + y4 * y4 + EPS)
    g2 = _eta(n2 + b2_ref[...].astype(f32))
    o2_ref[0] = (y0 * g2).astype(o2_ref.dtype)
    o2_ref[1] = (y1 * g2).astype(o2_ref.dtype)
    o2_ref[2] = (y2 * g2).astype(o2_ref.dtype)
    o2_ref[3] = (y3 * g2).astype(o2_ref.dtype)
    o2_ref[4] = (y4 * g2).astype(o2_ref.dtype)


def nonlinearity_forward(V, b1, b2):
    """Fused NonLinearity forward. V is a dict {0,1,2} with (A,C,2l+1) arrays."""
    v0, v1, v2 = V[0], V[1], V[2]
    A, C, _ = v0.shape
    assert v0.shape == (A, C, 1)
    assert v1.shape == (A, C, 3)
    assert v2.shape == (A, C, 5)
    dtype = v0.dtype
    itemsize = jnp.dtype(dtype).itemsize

    # Lane-dense presentation: channels last, vector components leading.
    # (One-time wrapper transposes; free reshape for l=0.)
    v0_l = v0.reshape(A, C)                                # (A, C)
    v1_l = jnp.transpose(v1, (2, 0, 1))                    # (3, A, C)
    v2_l = jnp.transpose(v2, (2, 0, 1))                    # (5, A, C)
    b1_2d = b1.reshape(1, C)
    b2_2d = b2.reshape(1, C)

    block_a = _choose_block_a(A, C, itemsize)
    grid = (pl.cdiv(A, block_a),)

    spec_v0 = pl.BlockSpec((block_a, C), lambda i: (i, 0))
    spec_v1 = pl.BlockSpec((3, block_a, C), lambda i: (0, i, 0))
    spec_v2 = pl.BlockSpec((5, block_a, C), lambda i: (0, i, 0))
    spec_b = pl.BlockSpec((1, C), lambda i: (0, 0))

    cost = pl.CostEstimate(
        flops=30 * A * C,
        transcendentals=8 * A * C,
        bytes_accessed=2 * 9 * A * C * itemsize + 2 * C * itemsize,
    )

    o0, o1, o2 = pl.pallas_call(
        nonlinearity_kernel,
        out_shape=(jax.ShapeDtypeStruct((A, C), dtype),
                   jax.ShapeDtypeStruct((3, A, C), dtype),
                   jax.ShapeDtypeStruct((5, A, C), dtype)),
        grid_spec=pltpu.PrefetchScalarGridSpec(
            num_scalar_prefetch=0,
            grid=grid,
            in_specs=[spec_v0, spec_v1, spec_v2, spec_b, spec_b],
            out_specs=(spec_v0, spec_v1, spec_v2),
        ),
        compiler_params=pltpu.CompilerParams(
            dimension_semantics=("parallel",)),
        cost_estimate=cost,
    )(v0_l, v1_l, v2_l, b1_2d, b2_2d)

    # Back to the module's (A, C, 2l+1) contract.
    return {0: o0.reshape(A, C, 1),
            1: jnp.transpose(o1, (1, 2, 0)),
            2: jnp.transpose(o2, (1, 2, 0))}


def nonlinearity_reference(V, b1, b2):
    """Pure-JAX reference mirroring the PyTorch forward."""
    bias = {1: b1, 2: b2}
    out = {0: _eta(V[0])}
    for k in (1, 2):
        temp = jnp.sqrt(jnp.sum(jnp.square(V[k]), axis=-1) + EPS) + bias[k][None, :]
        out[k] = jnp.einsum('acm,ac->acm', V[k], _eta(temp))
    return out


if __name__ == "__main__":
    key = jax.random.PRNGKey(0)
    A, C = 16, 16  # atoms, channels (output_dim)
    k0, k1, k2, kb1, kb2 = jax.random.split(key, 5)

    V = {0: jax.random.normal(k0, (A, C, 1), jnp.float32),
         1: jax.random.normal(k1, (A, C, 3), jnp.float32),
         2: jax.random.normal(k2, (A, C, 5), jnp.float32)}
    # PyTorch init is zeros_; use small random biases here to exercise the add.
    b1 = 0.1 * jax.random.normal(kb1, (C,), jnp.float32)
    b2 = 0.1 * jax.random.normal(kb2, (C,), jnp.float32)

    out = jax.jit(nonlinearity_forward)(V, b1, b2)
    out = jax.block_until_ready(out)

    # Shape / finiteness / numerical checks against the pure-JAX reference.
    ref = nonlinearity_reference(V, b1, b2)
    assert out[0].shape[-1] == 1
    assert out[1].shape[-1] == 3
    assert out[2].shape[-1] == 5
    for k in (0, 1, 2):
        assert out[k].shape == V[k].shape
        assert bool(jnp.all(jnp.isfinite(out[k])))
        assert bool(jnp.allclose(out[k], ref[k], atol=1e-5, rtol=1e-5))

    print("KERNEL_OK")
</pallas_src>

<mosaic_0001>
module attributes {stable_mosaic.version = 11 : i64} {
  func.func @nonlinearity_kernel(%arg0: i32, %arg1: memref<8x16xf32, #tpu.memory_space<vmem>>, %arg2: memref<3x8x16xf32, #tpu.memory_space<vmem>>, %arg3: memref<5x8x16xf32, #tpu.memory_space<vmem>>, %arg4: memref<1x16xf32, #tpu.memory_space<vmem>>, %arg5: memref<1x16xf32, #tpu.memory_space<vmem>>, %arg6: memref<8x16xf32, #tpu.memory_space<vmem>>, %arg7: memref<3x8x16xf32, #tpu.memory_space<vmem>>, %arg8: memref<5x8x16xf32, #tpu.memory_space<vmem>>) attributes {dimension_semantics = [#tpu.dimension_semantics<parallel>], iteration_bounds = array<i64: 2>, scalar_prefetch = 0 : i64, scratch_operands = 0 : i64, tpu.core_type = #tpu.core_type<tc>, window_params = [{transform_indices = @transform_0, window_bounds = array<i64: 8, 16>}, {transform_indices = @transform_1, window_bounds = array<i64: 3, 8, 16>}, {transform_indices = @transform_2, window_bounds = array<i64: 5, 8, 16>}, {pipeline_mode = #tpu.pipeline_mode<synchronous>, transform_indices = @transform_3, window_bounds = array<i64: 1, 16>}, {pipeline_mode = #tpu.pipeline_mode<synchronous>, transform_indices = @transform_4, window_bounds = array<i64: 1, 16>}, {transform_indices = @transform_5, window_bounds = array<i64: 8, 16>}, {transform_indices = @transform_6, window_bounds = array<i64: 3, 8, 16>}, {transform_indices = @transform_7, window_bounds = array<i64: 5, 8, 16>}]} {
    %c0 = arith.constant 0 : index
    %c0_0 = arith.constant 0 : index
    %0 = vector.load %arg1[%c0, %c0_0] : memref<8x16xf32, #tpu.memory_space<vmem>>, vector<8x16xf32>
    %cst = arith.constant 0.000000e+00 : f32
    %1 = vector.broadcast %cst : f32 to vector<8x16xf32>
    %2 = arith.maximumf %0, %1 : vector<8x16xf32>
    %3 = math.absf %0 : vector<8x16xf32>
    %cst_1 = arith.constant 0.000000e+00 : f32
    %4 = vector.broadcast %cst_1 : f32 to vector<8x16xf32>
    %5 = arith.subf %4, %3 : vector<8x16xf32>
    %6 = math.exp %5 : vector<8x16xf32>
    %7 = math.log1p %6 : vector<8x16xf32>
    %8 = arith.addf %2, %7 : vector<8x16xf32>
    %cst_2 = arith.constant 0.693147182 : f32
    %9 = vector.broadcast %cst_2 : f32 to vector<8x16xf32>
    %10 = arith.subf %8, %9 : vector<8x16xf32>
    %c0_3 = arith.constant 0 : index
    %c0_4 = arith.constant 0 : index
    %11 = vector.load %arg6[%c0_3, %c0_4] : memref<8x16xf32, #tpu.memory_space<vmem>>, vector<8x16xf32>
    tpu.vector_store %arg6[%c0_3, %c0_4], %10 {strides = array<i32>} : memref<8x16xf32, #tpu.memory_space<vmem>>, vector<8x16xf32>,
    %c0_5 = arith.constant 0 : index
    %c0_6 = arith.constant 0 : index
    %c0_7 = arith.constant 0 : index
    %12 = vector.load %arg2[%c0_5, %c0_6, %c0_7] : memref<3x8x16xf32, #tpu.memory_space<vmem>>, vector<1x8x16xf32>
    %13 = vector.shape_cast %12 : vector<1x8x16xf32> to vector<8x16xf32>
    %c1 = arith.constant 1 : index
    %c0_8 = arith.constant 0 : index
    %c0_9 = arith.constant 0 : index
    %14 = vector.load %arg2[%c1, %c0_8, %c0_9] : memref<3x8x16xf32, #tpu.memory_space<vmem>>, vector<1x8x16xf32>
    %15 = vector.shape_cast %14 : vector<1x8x16xf32> to vector<8x16xf32>
    %c2 = arith.constant 2 : index
    %c0_10 = arith.constant 0 : index
    %c0_11 = arith.constant 0 : index
    %16 = vector.load %arg2[%c2, %c0_10, %c0_11] : memref<3x8x16xf32, #tpu.memory_space<vmem>>, vector<1x8x16xf32>
    %17 = vector.shape_cast %16 : vector<1x8x16xf32> to vector<8x16xf32>
    %18 = arith.mulf %13, %13 : vector<8x16xf32>
    %19 = arith.mulf %15, %15 : vector<8x16xf32>
    %20 = arith.addf %18, %19 : vector<8x16xf32>
    %21 = arith.mulf %17, %17 : vector<8x16xf32>
    %22 = arith.addf %20, %21 : vector<8x16xf32>
    %cst_12 = arith.constant 9.99999971E-10 : f32
    %23 = vector.broadcast %cst_12 : f32 to vector<8x16xf32>
    %24 = arith.addf %22, %23 : vector<8x16xf32>
    %25 = math.sqrt %24 : vector<8x16xf32>
    %c0_13 = arith.constant 0 : index
    %c0_14 = arith.constant 0 : index
    %26 = vector.load %arg4[%c0_13, %c0_14] : memref<1x16xf32, #tpu.memory_space<vmem>>, vector<1x16xf32>
    %27 = vector.broadcast %26 : vector<1x16xf32> to vector<8x16xf32>
    %28 = arith.addf %25, %27 : vector<8x16xf32>
    %cst_15 = arith.constant 0.000000e+00 : f32
    %29 = vector.broadcast %cst_15 : f32 to vector<8x16xf32>
    %30 = arith.maximumf %28, %29 : vector<8x16xf32>
    %31 = math.absf %28 : vector<8x16xf32>
    %cst_16 = arith.constant 0.000000e+00 : f32
    %32 = vector.broadcast %cst_16 : f32 to vector<8x16xf32>
    %33 = arith.subf %32, %31 : vector<8x16xf32>
    %34 = math.exp %33 : vector<8x16xf32>
    %35 = math.log1p %34 : vector<8x16xf32>
    %36 = arith.addf %30, %35 : vector<8x16xf32>
    %cst_17 = arith.constant 0.693147182 : f32
    %37 = vector.broadcast %cst_17 : f32 to vector<8x16xf32>
    %38 = arith.subf %36, %37 : vector<8x16xf32>
    %39 = arith.mulf %13, %38 : vector<8x16xf32>
    %c0_18 = arith.constant 0 : index
    %c0_19 = arith.constant 0 : index
    %c0_20 = arith.constant 0 : index
    %40 = vector.load %arg7[%c0_18, %c0_19, %c0_20] : memref<3x8x16xf32, #tpu.memory_space<vmem>>, vector<1x8x16xf32>
    %41 = vector.shape_cast %40 : vector<1x8x16xf32> to vector<8x16xf32>
    %42 = vector.shape_cast %39 : vector<8x16xf32> to vector<1x8x16xf32>
    tpu.vector_store %arg7[%c0_18, %c0_19, %c0_20], %42 {strides = array<i32>} : memref<3x8x16xf32, #tpu.memory_space<vmem>>, vector<1x8x16xf32>,
    %43 = arith.mulf %15, %38 : vector<8x16xf32>
    %c1_21 = arith.constant 1 : index
    %c0_22 = arith.constant 0 : index
    %c0_23 = arith.constant 0 : index
    %44 = vector.load %arg7[%c1_21, %c0_22, %c0_23] : memref<3x8x16xf32, #tpu.memory_space<vmem>>, vector<1x8x16xf32>
    %45 = vector.shape_cast %44 : vector<1x8x16xf32> to vector<8x16xf32>
    %46 = vector.shape_cast %43 : vector<8x16xf32> to vector<1x8x16xf32>
    tpu.vector_store %arg7[%c1_21, %c0_22, %c0_23], %46 {strides = array<i32>} : memref<3x8x16xf32, #tpu.memory_space<vmem>>, vector<1x8x16xf32>,
    %47 = arith.mulf %17, %38 : vector<8x16xf32>
    %c2_24 = arith.constant 2 : index
    %c0_25 = arith.constant 0 : index
    %c0_26 = arith.constant 0 : index
    %48 = vector.load %arg7[%c2_24, %c0_25, %c0_26] : memref<3x8x16xf32, #tpu.memory_space<vmem>>, vector<1x8x16xf32>
    %49 = vector.shape_cast %48 : vector<1x8x16xf32> to vector<8x16xf32>
    %50 = vector.shape_cast %47 : vector<8x16xf32> to vector<1x8x16xf32>
    tpu.vector_store %arg7[%c2_24, %c0_25, %c0_26], %50 {strides = array<i32>} : memref<3x8x16xf32, #tpu.memory_space<vmem>>, vector<1x8x16xf32>,
    %c0_27 = arith.constant 0 : index
    %c0_28 = arith.constant 0 : index
    %c0_29 = arith.constant 0 : index
    %51 = vector.load %arg3[%c0_27, %c0_28, %c0_29] : memref<5x8x16xf32, #tpu.memory_space<vmem>>, vector<1x8x16xf32>
    %52 = vector.shape_cast %51 : vector<1x8x16xf32> to vector<8x16xf32>
    %c1_30 = arith.constant 1 : index
    %c0_31 = arith.constant 0 : index
    %c0_32 = arith.constant 0 : index
    %53 = vector.load %arg3[%c1_30, %c0_31, %c0_32] : memref<5x8x16xf32, #tpu.memory_space<vmem>>, vector<1x8x16xf32>
    %54 = vector.shape_cast %53 : vector<1x8x16xf32> to vector<8x16xf32>
    %c2_33 = arith.constant 2 : index
    %c0_34 = arith.constant 0 : index
    %c0_35 = arith.constant 0 : index
    %55 = vector.load %arg3[%c2_33, %c0_34, %c0_35] : memref<5x8x16xf32, #tpu.memory_space<vmem>>, vector<1x8x16xf32>
    %56 = vector.shape_cast %55 : vector<1x8x16xf32> to vector<8x16xf32>
    %c3 = arith.constant 3 : index
    %c0_36 = arith.constant 0 : index
    %c0_37 = arith.constant 0 : index
    %57 = vector.load %arg3[%c3, %c0_36, %c0_37] : memref<5x8x16xf32, #tpu.memory_space<vmem>>, vector<1x8x16xf32>
    %58 = vector.shape_cast %57 : vector<1x8x16xf32> to vector<8x16xf32>
    %c4 = arith.constant 4 : index
    %c0_38 = arith.constant 0 : index
    %c0_39 = arith.constant 0 : index
    %59 = vector.load %arg3[%c4, %c0_38, %c0_39] : memref<5x8x16xf32, #tpu.memory_space<vmem>>, vector<1x8x16xf32>
    %60 = vector.shape_cast %59 : vector<1x8x16xf32> to vector<8x16xf32>
    %61 = arith.mulf %52, %52 : vector<8x16xf32>
    %62 = arith.mulf %54, %54 : vector<8x16xf32>
    %63 = arith.addf %61, %62 : vector<8x16xf32>
    %64 = arith.mulf %56, %56 : vector<8x16xf32>
    %65 = arith.addf %63, %64 : vector<8x16xf32>
    %66 = arith.mulf %58, %58 : vector<8x16xf32>
    %67 = arith.addf %65, %66 : vector<8x16xf32>
    %68 = arith.mulf %60, %60 : vector<8x16xf32>
    %69 = arith.addf %67, %68 : vector<8x16xf32>
    %cst_40 = arith.constant 9.99999971E-10 : f32
    %70 = vector.broadcast %cst_40 : f32 to vector<8x16xf32>
    %71 = arith.addf %69, %70 : vector<8x16xf32>
    %72 = math.sqrt %71 : vector<8x16xf32>
    %c0_41 = arith.constant 0 : index
    %c0_42 = arith.constant 0 : index
    %73 = vector.load %arg5[%c0_41, %c0_42] : memref<1x16xf32, #tpu.memory_space<vmem>>, vector<1x16xf32>
    %74 = vector.broadcast %73 : vector<1x16xf32> to vector<8x16xf32>
    %75 = arith.addf %72, %74 : vector<8x16xf32>
    %cst_43 = arith.constant 0.000000e+00 : f32
    %76 = vector.broadcast %cst_43 : f32 to vector<8x16xf32>
    %77 = arith.maximumf %75, %76 : vector<8x16xf32>
    %78 = math.absf %75 : vector<8x16xf32>
    %cst_44 = arith.constant 0.000000e+00 : f32
    %79 = vector.broadcast %cst_44 : f32 to vector<8x16xf32>
    %80 = arith.subf %79, %78 : vector<8x16xf32>
    %81 = math.exp %80 : vector<8x16xf32>
    %82 = math.log1p %81 : vector<8x16xf32>
    %83 = arith.addf %77, %82 : vector<8x16xf32>
    %cst_45 = arith.constant 0.693147182 : f32
    %84 = vector.broadcast %cst_45 : f32 to vector<8x16xf32>
    %85 = arith.subf %83, %84 : vector<8x16xf32>
    %86 = arith.mulf %52, %85 : vector<8x16xf32>
    %c0_46 = arith.constant 0 : index
    %c0_47 = arith.constant 0 : index
    %c0_48 = arith.constant 0 : index
    %87 = vector.load %arg8[%c0_46, %c0_47, %c0_48] : memref<5x8x16xf32, #tpu.memory_space<vmem>>, vector<1x8x16xf32>
    %88 = vector.shape_cast %87 : vector<1x8x16xf32> to vector<8x16xf32>
    %89 = vector.shape_cast %86 : vector<8x16xf32> to vector<1x8x16xf32>
    tpu.vector_store %arg8[%c0_46, %c0_47, %c0_48], %89 {strides = array<i32>} : memref<5x8x16xf32, #tpu.memory_space<vmem>>, vector<1x8x16xf32>,
    %90 = arith.mulf %54, %85 : vector<8x16xf32>
    %c1_49 = arith.constant 1 : index
    %c0_50 = arith.constant 0 : index
    %c0_51 = arith.constant 0 : index
    %91 = vector.load %arg8[%c1_49, %c0_50, %c0_51] : memref<5x8x16xf32, #tpu.memory_space<vmem>>, vector<1x8x16xf32>
    %92 = vector.shape_cast %91 : vector<1x8x16xf32> to vector<8x16xf32>
    %93 = vector.shape_cast %90 : vector<8x16xf32> to vector<1x8x16xf32>
    tpu.vector_store %arg8[%c1_49, %c0_50, %c0_51], %93 {strides = array<i32>} : memref<5x8x16xf32, #tpu.memory_space<vmem>>, vector<1x8x16xf32>,
    %94 = arith.mulf %56, %85 : vector<8x16xf32>
    %c2_52 = arith.constant 2 : index
    %c0_53 = arith.constant 0 : index
    %c0_54 = arith.constant 0 : index
    %95 = vector.load %arg8[%c2_52, %c0_53, %c0_54] : memref<5x8x16xf32, #tpu.memory_space<vmem>>, vector<1x8x16xf32>
    %96 = vector.shape_cast %95 : vector<1x8x16xf32> to vector<8x16xf32>
    %97 = vector.shape_cast %94 : vector<8x16xf32> to vector<1x8x16xf32>
    tpu.vector_store %arg8[%c2_52, %c0_53, %c0_54], %97 {strides = array<i32>} : memref<5x8x16xf32, #tpu.memory_space<vmem>>, vector<1x8x16xf32>,
    %98 = arith.mulf %58, %85 : vector<8x16xf32>
    %c3_55 = arith.constant 3 : index
    %c0_56 = arith.constant 0 : index
    %c0_57 = arith.constant 0 : index
    %99 = vector.load %arg8[%c3_55, %c0_56, %c0_57] : memref<5x8x16xf32, #tpu.memory_space<vmem>>, vector<1x8x16xf32>
    %100 = vector.shape_cast %99 : vector<1x8x16xf32> to vector<8x16xf32>
    %101 = vector.shape_cast %98 : vector<8x16xf32> to vector<1x8x16xf32>
    tpu.vector_store %arg8[%c3_55, %c0_56, %c0_57], %101 {strides = array<i32>} : memref<5x8x16xf32, #tpu.memory_space<vmem>>, vector<1x8x16xf32>,
    %102 = arith.mulf %60, %85 : vector<8x16xf32>
    %c4_58 = arith.constant 4 : index
    %c0_59 = arith.constant 0 : index
    %c0_60 = arith.constant 0 : index
    %103 = vector.load %arg8[%c4_58, %c0_59, %c0_60] : memref<5x8x16xf32, #tpu.memory_space<vmem>>, vector<1x8x16xf32>
    %104 = vector.shape_cast %103 : vector<1x8x16xf32> to vector<8x16xf32>
    %105 = vector.shape_cast %102 : vector<8x16xf32> to vector<1x8x16xf32>
    tpu.vector_store %arg8[%c4_58, %c0_59, %c0_60], %105 {strides = array<i32>} : memref<5x8x16xf32, #tpu.memory_space<vmem>>, vector<1x8x16xf32>,
    return
  }
  func.func @transform_0(%arg0: i32) -> (i32, i32) {
    %c0_i32 = arith.constant 0 : i32
    %c0_i32_0 = arith.constant 0 : i32
    return %arg0, %c0_i32 : i32, i32
  }
  func.func @transform_1(%arg0: i32) -> (i32, i32, i32) {
    %c0_i32 = arith.constant 0 : i32
    %c0_i32_0 = arith.constant 0 : i32
    %c0_i32_1 = arith.constant 0 : i32
    return %c0_i32, %arg0, %c0_i32_0 : i32, i32, i32
  }
  func.func @transform_2(%arg0: i32) -> (i32, i32, i32) {
    %c0_i32 = arith.constant 0 : i32
    %c0_i32_0 = arith.constant 0 : i32
    %c0_i32_1 = arith.constant 0 : i32
    return %c0_i32, %arg0, %c0_i32_0 : i32, i32, i32
  }
  func.func @transform_3(%arg0: i32) -> (i32, i32) {
    %c0_i32 = arith.constant 0 : i32
    %c0_i32_0 = arith.constant 0 : i32
    %c0_i32_1 = arith.constant 0 : i32
    return %c0_i32, %c0_i32_0 : i32, i32
  }
  func.func @transform_4(%arg0: i32) -> (i32, i32) {
    %c0_i32 = arith.constant 0 : i32
    %c0_i32_0 = arith.constant 0 : i32
    %c0_i32_1 = arith.constant 0 : i32
    return %c0_i32, %c0_i32_0 : i32, i32
  }
  func.func @transform_5(%arg0: i32) -> (i32, i32) {
    %c0_i32 = arith.constant 0 : i32
    %c0_i32_0 = arith.constant 0 : i32
    return %arg0, %c0_i32 : i32, i32
  }
  func.func @transform_6(%arg0: i32) -> (i32, i32, i32) {
    %c0_i32 = arith.constant 0 : i32
    %c0_i32_0 = arith.constant 0 : i32
    %c0_i32_1 = arith.constant 0 : i32
    return %c0_i32, %arg0, %c0_i32_0 : i32, i32, i32
  }
  func.func @transform_7(%arg0: i32) -> (i32, i32, i32) {
    %c0_i32 = arith.constant 0 : i32
    %c0_i32_0 = arith.constant 0 : i32
    %c0_i32_1 = arith.constant 0 : i32
    return %c0_i32, %arg0, %c0_i32_0 : i32, i32, i32
  }
}

</mosaic_0001>

<llo_original>
// kernel: nonlinearity_forward.1
$region0: #{nonlinearity_forward.1}
  #allocation0 [shape = 'u32[]', space=smem, size = 0x4, offset = 0x4, fixed_abs, tag = 'smem constant byte address 0x4 - core index']
  #allocation1 [shape = 'u32[144,128]{1,0:T(1,128)}', space=vmem, size = 0x12000, scoped, tag = 'internal scratch']
  %s0 = inlined_call_operand.hbm [shape: f32[16,16], index: 0, kind: input, shape index: {}]
  %s1 = inlined_call_operand.hbm [shape: f32[3,16,16], index: 1, kind: input, shape index: {}]
  %s2 = inlined_call_operand.hbm [shape: f32[5,16,16], index: 2, kind: input, shape index: {}]
  %s3 = inlined_call_operand.vmem [shape: f32[1,16], index: 3, kind: input, shape index: {}]
  %s4 = inlined_call_operand.vmem [shape: f32[1,16], index: 4, kind: input, shape index: {}]
  %s5 = inlined_call_operand.hbm [shape: f32[16,16], index: 5, kind: output, shape index: {0}]
  %s6 = inlined_call_operand.hbm [shape: f32[3,16,16], index: 6, kind: output, shape index: {1}]
  %s7 = inlined_call_operand.hbm [shape: f32[5,16,16], index: 7, kind: output, shape index: {2}]
  %8 = xla_tuple %s5, %s6, %s7
  %s9 = sld [smem:[#allocation0]]
  $region81: #{nonlinearity_forward.1} parent=0
    _
  %s11 = ssub.s32 1, %s9
  %s12 = scalar_select 0, %s11, %s9
  $region1: #{nonlinearity_forward.1} parent=0
    #allocation2 [shape = 'u8[8192]{0}', space=vmem, size = 0x2000, scoped, tag = 'input window, operand 0']
    #allocation3 [shape = 's32[2]{0}', space=sflag, size = 0x8, scoped, tag = 'scoped memory for nonlinearity_forward.1']
    #allocation4 [shape = 's32[2]{0}', space=sflag, size = 0x8, scoped, tag = 'scoped memory for nonlinearity_forward.1']
    #allocation5 [shape = 'u8[24576]{0}', space=vmem, size = 0x6000, scoped, tag = 'input window, operand 1']
    #allocation6 [shape = 's32[2]{0}', space=sflag, size = 0x8, scoped, tag = 'scoped memory for nonlinearity_forward.1']
    #allocation7 [shape = 'u8[40960]{0}', space=vmem, size = 0xa000, scoped, tag = 'input window, operand 2']
    #allocation8 [shape = 'u8[8192]{0}', space=vmem, size = 0x2000, scoped, tag = 'output window, operand 0']
    #allocation9 [shape = 'u8[24576]{0}', space=vmem, size = 0x6000, scoped, tag = 'output window, operand 1']
    #allocation10 [shape = 's32[2]{0}', space=sflag, size = 0x8, scoped, tag = 'scoped memory for nonlinearity_forward.1']
    #allocation11 [shape = 'u8[40960]{0}', space=vmem, size = 0xa000, scoped, tag = 'output window, operand 2']
    %13 = vsyncpa [#allocation3], 0
    %s14 = scalar_lea.sflag [#allocation3], 1
    %15 = vsyncpa %s14, 0
    %16 = vsyncpa [#allocation6], 0
    %s17 = scalar_lea.sflag [#allocation6], 1
    %18 = vsyncpa %s17, 0
    %19 = vsyncpa [#allocation4], 0
    %s20 = scalar_lea.sflag [#allocation4], 1
    %21 = vsyncpa %s20, 0
    %22 = vsyncpa [#allocation10], 0
    %s23 = scalar_lea.sflag [#allocation10], 1
    %24 = vsyncpa %s23, 0
    loop: start=0, step=1, limit=4
    $region2: #{nonlinearity_forward.1} parent=1 // loop_pre_header
      _
    $region3: #{nonlinearity_forward.1} parent=1 // loop_header
      %s26 = sphi 0, %s30
      %p27 = scmp.ge.s32.totalorder %s26, 4
      %s36 = sphi 0, %s38
      %s39 = sphi 0, %s36
      %s40 = sphi 0, %s39
      %s56 = sphi 0, %s40
      %s62 = sphi 0, %s64
      %s65 = sphi 0, %s62
      %s66 = sphi 0, %s65
      %s82 = sphi 0, %s66
      %s88 = sphi 0, %s90
      %s91 = sphi 0, %s88
      %s92 = sphi 0, %s91
      %s108 = sphi 0, %s92
      %s112 = sphi 0, %s112
      %s114 = sphi 0, %s112
      %s115 = sphi 0, %s114
      %s129 = sphi 0, %s115
      %s133 = sphi 0, %s133
      %s135 = sphi 0, %s133
      %s136 = sphi 0, %s135
      %s150 = sphi 0, %s136
      %s156 = sphi 0, %s158
      %s159 = sphi 0, %s156
      %s160 = sphi 0, %s159
      %s176 = sphi 0, %s160
      %s182 = sphi 0, %s184
      %s185 = sphi 0, %s182
      %s186 = sphi 0, %s185
      %s202 = sphi 0, %s186
      %s208 = sphi 0, %s210
      %s211 = sphi 0, %s208
      %s212 = sphi 0, %s211
      %s228 = sphi 0, %s212
    $region4: #{nonlinearity_forward.1} parent=1 // loop_header_branch
      %29 = sbr.rel (%p27) target = $region8
    $region5: #{nonlinearity_forward.1} parent=1 // loop_body
      %s31 = ssub.s32 %s26, 1
      %s32 = ssub.s32 %s26, 2
      %s33 = sadd.s32 %s26, 1
      %s34 = ssub.s32 %s26, %s33
      %p35 = scmp.eq.s32.totalorder %s34, 0
      %s37 = sadd.s32 %s36, 1
      %s38 = scalar_select %p35, %s36, %s37
      %p41 = pneg %p35
      %p42 = scmp.eq.s32.totalorder %s26, 1
      %p43 = por %p41, %p42
      %p44 = scmp.ne.s32.totalorder %s36, %s39
      %p45 = scmp.eq.s32.totalorder %s26, 0
      %p46 = por %p44, %p45
      %p47 = scmp.ne.s32.totalorder %s36, %s39
      %p48 = scmp.eq.s32.totalorder %s31, 1
      %p49 = por %p47, %p48
      %p50 = scmp.ne.s32.totalorder %s39, %s40
      %p51 = scmp.eq.s32.totalorder %s31, 0
      %p52 = por %p50, %p51
      %p53 = scmp.ne.s32.totalorder %s39, %s40
      %p54 = scmp.eq.s32.totalorder %s32, 1
      %p55 = por %p53, %p54
      %p57 = scmp.ne.s32.totalorder %s40, %s56
      %p58 = scmp.eq.s32.totalorder %s32, 0
      %p59 = por %p57, %p58
      %s60 = ssub.s32 %s26, %s33
      %p61 = scmp.eq.s32.totalorder %s60, 0
      %s63 = sadd.s32 %s62, 1
      %s64 = scalar_select %p61, %s62, %s63
      %p67 = pneg %p61
      %p68 = scmp.eq.s32.totalorder %s26, 1
      %p69 = por %p67, %p68
      %p70 = scmp.ne.s32.totalorder %s62, %s65
      %p71 = scmp.eq.s32.totalorder %s26, 0
      %p72 = por %p70, %p71
      %p73 = scmp.ne.s32.totalorder %s62, %s65
      %p74 = scmp.eq.s32.totalorder %s31, 1
      %p75 = por %p73, %p74
      %p76 = scmp.ne.s32.totalorder %s65, %s66
      %p77 = scmp.eq.s32.totalorder %s31, 0
      %p78 = por %p76, %p77
      %p79 = scmp.ne.s32.totalorder %s65, %s66
      %p80 = scmp.eq.s32.totalorder %s32, 1
      %p81 = por %p79, %p80
      %p83 = scmp.ne.s32.totalorder %s66, %s82
      %p84 = scmp.eq.s32.totalorder %s32, 0
      %p85 = por %p83, %p84
      %s86 = ssub.s32 %s26, %s33
      %p87 = scmp.eq.s32.totalorder %s86, 0
      %s89 = sadd.s32 %s88, 1
      %s90 = scalar_select %p87, %s88, %s89
      %p93 = pneg %p87
      %p94 = scmp.eq.s32.totalorder %s26, 1
      %p95 = por %p93, %p94
      %p96 = scmp.ne.s32.totalorder %s88, %s91
      %p97 = scmp.eq.s32.totalorder %s26, 0
      %p98 = por %p96, %p97
      %p99 = scmp.ne.s32.totalorder %s88, %s91
      %p100 = scmp.eq.s32.totalorder %s31, 1
      %p101 = por %p99, %p100
      %p102 = scmp.ne.s32.totalorder %s91, %s92
      %p103 = scmp.eq.s32.totalorder %s31, 0
      %p104 = por %p102, %p103
      %p105 = scmp.ne.s32.totalorder %s91, %s92
      %p106 = scmp.eq.s32.totalorder %s32, 1
      %p107 = por %p105, %p106
      %p109 = scmp.ne.s32.totalorder %s92, %s108
      %p110 = scmp.eq.s32.totalorder %s32, 0
      %p111 = por %p109, %p110
      %s113 = sadd.s32 %s112, 1
      %p116 = scmp.eq.s32.totalorder %s26, 1
      %p117 = scmp.ne.s32.totalorder %s112, %s114
      %p118 = scmp.eq.s32.totalorder %s26, 0
      %p119 = por %p117, %p118
      %p120 = scmp.ne.s32.totalorder %s112, %s114
      %p121 = scmp.eq.s32.totalorder %s31, 1
      %p122 = por %p120, %p121
      %p123 = scmp.ne.s32.totalorder %s114, %s115
      %p124 = scmp.eq.s32.totalorder %s31, 0
      %p125 = por %p123, %p124
      %p126 = scmp.ne.s32.totalorder %s114, %s115
      %p127 = scmp.eq.s32.totalorder %s32, 1
      %p128 = por %p126, %p127
      %p130 = scmp.ne.s32.totalorder %s115, %s129
      %p131 = scmp.eq.s32.totalorder %s32, 0
      %p132 = por %p130, %p131
      %s134 = sadd.s32 %s133, 1
      %p137 = scmp.eq.s32.totalorder %s26, 1
      %p138 = scmp.ne.s32.totalorder %s133, %s135
      %p139 = scmp.eq.s32.totalorder %s26, 0
      %p140 = por %p138, %p139
      %p141 = scmp.ne.s32.totalorder %s133, %s135
      %p142 = scmp.eq.s32.totalorder %s31, 1
      %p143 = por %p141, %p142
      %p144 = scmp.ne.s32.totalorder %s135, %s136
      %p145 = scmp.eq.s32.totalorder %s31, 0
      %p146 = por %p144, %p145
      %p147 = scmp.ne.s32.totalorder %s135, %s136
      %p148 = scmp.eq.s32.totalorder %s32, 1
      %p149 = por %p147, %p148
      %p151 = scmp.ne.s32.totalorder %s136, %s150
      %p152 = scmp.eq.s32.totalorder %s32, 0
      %p153 = por %p151, %p152
      %s154 = ssub.s32 %s26, %s33
      %p155 = scmp.eq.s32.totalorder %s154, 0
      %s157 = sadd.s32 %s156, 1
      %s158 = scalar_select %p155, %s156, %s157
      %p161 = pneg %p155
      %p162 = scmp.eq.s32.totalorder %s26, 1
      %p163 = por %p161, %p162
      %p164 = scmp.ne.s32.totalorder %s156, %s159
      %p165 = scmp.eq.s32.totalorder %s26, 0
      %p166 = por %p164, %p165
      %p167 = scmp.ne.s32.totalorder %s156, %s159
      %p168 = scmp.eq.s32.totalorder %s31, 1
      %p169 = por %p167, %p168
      %p170 = scmp.ne.s32.totalorder %s159, %s160
      %p171 = scmp.eq.s32.totalorder %s31, 0
      %p172 = por %p170, %p171
      %p173 = scmp.ne.s32.totalorder %s159, %s160
      %p174 = scmp.eq.s32.totalorder %s32, 1
      %p175 = por %p173, %p174
      %p177 = scmp.ne.s32.totalorder %s160, %s176
      %p178 = scmp.eq.s32.totalorder %s32, 0
      %p179 = por %p177, %p178
      %s180 = ssub.s32 %s26, %s33
      %p181 = scmp.eq.s32.totalorder %s180, 0
      %s183 = sadd.s32 %s182, 1
      %s184 = scalar_select %p181, %s182, %s183
      %p187 = pneg %p181
      %p188 = scmp.eq.s32.totalorder %s26, 1
      %p189 = por %p187, %p188
      %p190 = scmp.ne.s32.totalorder %s182, %s185
      %p191 = scmp.eq.s32.totalorder %s26, 0
      %p192 = por %p190, %p191
      %p193 = scmp.ne.s32.totalorder %s182, %s185
      %p194 = scmp.eq.s32.totalorder %s31, 1
      %p195 = por %p193, %p194
      %p196 = scmp.ne.s32.totalorder %s185, %s186
      %p197 = scmp.eq.s32.totalorder %s31, 0
      %p198 = por %p196, %p197
      %p199 = scmp.ne.s32.totalorder %s185, %s186
      %p200 = scmp.eq.s32.totalorder %s32, 1
      %p201 = por %p199, %p200
      %p203 = scmp.ne.s32.totalorder %s186, %s202
      %p204 = scmp.eq.s32.totalorder %s32, 0
      %p205 = por %p203, %p204
      %s206 = ssub.s32 %s26, %s33
      %p207 = scmp.eq.s32.totalorder %s206, 0
      %s209 = sadd.s32 %s208, 1
      %s210 = scalar_select %p207, %s208, %s209
      %p213 = pneg %p207
      %p214 = scmp.eq.s32.totalorder %s26, 1
      %p215 = por %p213, %p214
      %p216 = scmp.ne.s32.totalorder %s208, %s211
      %p217 = scmp.eq.s32.totalorder %s26, 0
      %p218 = por %p216, %p217
      %p219 = scmp.ne.s32.totalorder %s208, %s211
      %p220 = scmp.eq.s32.totalorder %s31, 1
      %p221 = por %p219, %p220
      %p222 = scmp.ne.s32.totalorder %s211, %s212
      %p223 = scmp.eq.s32.totalorder %s31, 0
      %p224 = por %p222, %p223
      %p225 = scmp.ne.s32.totalorder %s211, %s212
      %p226 = scmp.eq.s32.totalorder %s32, 1
      %p227 = por %p225, %p226
      %p229 = scmp.ne.s32.totalorder %s212, %s228
      %p230 = scmp.eq.s32.totalorder %s32, 0
      %p231 = por %p229, %p230
      %p232 = scmp.le.s32.totalorder 1, %s26
      %p233 = scmp.lt.s32.totalorder %s26, 3
      %p234 = pnand %p232, %p233
      %p235 = pneg %p234
      // Predicated region
      $region9: #{nonlinearity_forward.1} parent=5 // pred_check
        _
      $region10: #{nonlinearity_forward.1} parent=5 // pred_check_branch
        %237 = sbr.rel (%p234) target = $region12
      $region11: #{nonlinearity_forward.1} parent=5 // pred_region
        %s238 = ssub.s32 %s26, 1
        // Predicated region
        $region13: #{nonlinearity_forward.1} parent=11 // pred_check
          %p239 = pneg %p125
        $region14: #{nonlinearity_forward.1} parent=11 // pred_check_branch
          %241 = sbr.rel (%p239) target = $region16
        $region15: #{nonlinearity_forward.1} parent=11 // pred_region
          _
        $region16: #{nonlinearity_forward.1} parent=11 // pred_fallthru
          _
        // Predicated region
        $region17: #{nonlinearity_forward.1} parent=11 // pred_check
          %p242 = pneg %p146
        $region18: #{nonlinearity_forward.1} parent=11 // pred_check_branch
          %244 = sbr.rel (%p242) target = $region20
        $region19: #{nonlinearity_forward.1} parent=11 // pred_region
          _
        $region20: #{nonlinearity_forward.1} parent=11 // pred_fallthru
          _
      $region12: #{nonlinearity_forward.1} parent=5 // pred_fallthru
        _
      %p245 = scmp.lt.s32.totalorder %s26, 2
      // Predicated region
      $region21: #{nonlinearity_forward.1} parent=5 // pred_check
        %p246 = pneg %p245
      $region22: #{nonlinearity_forward.1} parent=5 // pred_check_branch
        %248 = sbr.rel (%p246) target = $region24
      $region23: #{nonlinearity_forward.1} parent=5 // pred_region
        // Predicated region
        $region25: #{nonlinearity_forward.1} parent=23 // pred_check
          %p249 = pneg %p46
        $region26: #{nonlinearity_forward.1} parent=23 // pred_check_branch
          %251 = sbr.rel (%p249) target = $region28
        $region27: #{nonlinearity_forward.1} parent=23 // pred_region
          %s252 = sand.u32 %s36, 1
          %s253 = scalar_lea.sflag [#allocation3], %s252
          %s254 = sand.u32 %s36, 1
          %s255 = smul.addr %s254, 8
          %s256 = scalar_lea.vmem [#allocation2], %s255
          %s258 = ssub.s32 128, 128
          %259 = vsyncadd %s253, %s258
          %s260 = smul.addr %s26, 128
          %s261 = scalar_lea.hbm %s0, %s260
          %s263 = sshll.u32 %s256, 4
          %s264 = int_to_ptr.vmem [resolvable:$true] %s263
          %266 = dma.hbm_to_vmem [thread:$0]  %s261, 128, %s264, %s253
        $region28: #{nonlinearity_forward.1} parent=23 // pred_fallthru
          _
        // Predicated region
        $region29: #{nonlinearity_forward.1} parent=23 // pred_check
          %p267 = pneg %p72
        $region30: #{nonlinearity_forward.1} parent=23 // pred_check_branch
          %269 = sbr.rel (%p267) target = $region32
        $region31: #{nonlinearity_forward.1} parent=23 // pred_region
          %s270 = sand.u32 %s26, 1
          %s271 = scalar_lea.sflag [#allocation6], %s270
          %s272 = sand.u32 %s62, 1
          %s273 = smul.addr %s272, 24
          %s274 = scalar_lea.vmem [#allocation5], %s273
          %s276 = ssub.s32 384, 384
          %277 = vsyncadd %s271, %s276
          %s278 = smul.addr %s26, 128
          %s279 = scalar_lea.hbm %s1, %s278
          %s280 = sshll.u32 %s274, 4
          %s281 = int_to_ptr.vmem [resolvable:$true] %s280
          %286 = dma.hbm_to_vmem [thread:$0]  %s279, 384, %s281, %s271, 256, 128, 8
        $region32: #{nonlinearity_forward.1} parent=23 // pred_fallthru
          _
        // Predicated region
        $region33: #{nonlinearity_forward.1} parent=23 // pred_check
          %p287 = pneg %p98
        $region34: #{nonlinearity_forward.1} parent=23 // pred_check_branch
          %289 = sbr.rel (%p287) target = $region36
        $region35: #{nonlinearity_forward.1} parent=23 // pred_region
          %s290 = sand.u32 %s26, 1
          %s291 = scalar_lea.sflag [#allocation6], %s290
          %s292 = sand.u32 %s88, 1
          %s293 = smul.addr %s292, 40
          %s294 = scalar_lea.vmem [#allocation7], %s293
          %s296 = ssub.s32 640, 640
          %297 = vsyncadd %s291, %s296
          %s298 = smul.addr %s26, 128
          %s299 = scalar_lea.hbm %s2, %s298
          %s300 = sshll.u32 %s294, 4
          %s301 = int_to_ptr.vmem [resolvable:$true] %s300
          %306 = dma.hbm_to_vmem [thread:$0]  %s299, 640, %s301, %s291, 256, 128, 8
        $region36: #{nonlinearity_forward.1} parent=23 // pred_fallthru
          _
      $region24: #{nonlinearity_forward.1} parent=5 // pred_fallthru
        _
      %p307 = scmp.le.s32.totalorder 1, %s26
      %p308 = scmp.lt.s32.totalorder %s26, 3
      %p309 = pnand %p307, %p308
      %p310 = pneg %p309
      // Predicated region
      $region37: #{nonlinearity_forward.1} parent=5 // pred_check
        _
      $region38: #{nonlinearity_forward.1} parent=5 // pred_check_branch
        %312 = sbr.rel (%p309) target = $region40
      $region39: #{nonlinearity_forward.1} parent=5 // pred_region
        %s313 = ssub.s32 %s26, 1
        %s314 = sand.u32 %s39, 1
        %s315 = scalar_lea.sflag [#allocation3], %s314
        %s316 = sand.u32 %s39, 1
        %s317 = smul.addr %s316, 8
        %s318 = scalar_lea.vmem [#allocation2], %s317
        // Predicated region
        $region41: #{nonlinearity_forward.1} parent=39 // pred_check
          %p319 = pneg %p52
        $region42: #{nonlinearity_forward.1} parent=39 // pred_check_branch
          %321 = sbr.rel (%p319) target = $region44
        $region43: #{nonlinearity_forward.1} parent=39 // pred_region
          %322 = dma.done %s315, 128
        $region44: #{nonlinearity_forward.1} parent=39 // pred_fallthru
          _
        %s323 = sand.u32 %s31, 1
        %s324 = scalar_lea.sflag [#allocation6], %s323
        %s325 = sand.u32 %s65, 1
        %s326 = smul.addr %s325, 24
        %s327 = scalar_lea.vmem [#allocation5], %s326
        // Predicated region
        $region45: #{nonlinearity_forward.1} parent=39 // pred_check
          %p328 = pneg %p78
        $region46: #{nonlinearity_forward.1} parent=39 // pred_check_branch
          %330 = sbr.rel (%p328) target = $region48
        $region47: #{nonlinearity_forward.1} parent=39 // pred_region
          %331 = dma.done %s324, 384
        $region48: #{nonlinearity_forward.1} parent=39 // pred_fallthru
          _
        %s332 = sand.u32 %s31, 1
        %s333 = scalar_lea.sflag [#allocation6], %s332
        %s334 = sand.u32 %s91, 1
        %s335 = smul.addr %s334, 40
        %s336 = scalar_lea.vmem [#allocation7], %s335
        // Predicated region
        $region49: #{nonlinearity_forward.1} parent=39 // pred_check
          %p337 = pneg %p104
        $region50: #{nonlinearity_forward.1} parent=39 // pred_check_branch
          %339 = sbr.rel (%p337) target = $region52
        $region51: #{nonlinearity_forward.1} parent=39 // pred_region
          %340 = dma.done %s333, 640
        $region52: #{nonlinearity_forward.1} parent=39 // pred_fallthru
          _
        %s341 = sand.u32 %s39, 1
        %s342 = scalar_lea.sflag [#allocation3], %s341
        %s343 = sand.u32 %s39, 1
        %s344 = smul.addr %s343, 8
        %s345 = scalar_lea.vmem [#allocation2], %s344
        %p346 = pneg %p52
        %p347 = pneg %p49
        %s348 = sand.u32 %s31, 1
        %s349 = scalar_lea.sflag [#allocation6], %s348
        %s350 = sand.u32 %s65, 1
        %s351 = smul.addr %s350, 24
        %s352 = scalar_lea.vmem [#allocation5], %s351
        %p353 = pneg %p78
        %p354 = pneg %p75
        %s355 = sand.u32 %s31, 1
        %s356 = scalar_lea.sflag [#allocation6], %s355
        %s357 = sand.u32 %s91, 1
        %s358 = smul.addr %s357, 40
        %s359 = scalar_lea.vmem [#allocation7], %s358
        %p360 = pneg %p104
        %p361 = pneg %p101
        %p362 = pneg %p125
        %p363 = pneg %p122
        %p364 = pneg %p146
        %p365 = pneg %p143
        %p366 = pneg %p172
        %p367 = pneg %p169
        %s368 = sand.u32 %s159, 1
        %s369 = scalar_lea.sflag [#allocation4], %s368
        %s370 = sand.u32 %s159, 1
        %s371 = smul.addr %s370, 8
        %s372 = scalar_lea.vmem [#allocation8], %s371
        %p373 = pneg %p198
        %p374 = pneg %p195
        %s375 = sand.u32 %s31, 1
        %s376 = scalar_lea.sflag [#allocation10], %s375
        %s377 = sand.u32 %s185, 1
        %s378 = smul.addr %s377, 24
        %s379 = scalar_lea.vmem [#allocation9], %s378
        %p380 = pneg %p224
        %p381 = pneg %p221
        %s382 = sand.u32 %s31, 1
        %s383 = scalar_lea.sflag [#allocation10], %s382
        %s384 = sand.u32 %s211, 1
        %s385 = smul.addr %s384, 40
        %s386 = scalar_lea.vmem [#allocation11], %s385
        %v387 = vld [vmem:[%s318] sm:$0xff]
        %v388 = vmax.f32 %v387, 0.0
        %v389 = vand.u32 2147483647, %v387
        %v390 = vsub.f32 0.0, %v389
        %v391 = vmul.f32 %v390, 1.442695
        %v392 = vpow.pop %v391
        %v393 = vadd.f32 %v392, 1.0
        %v394 = vlog2.pop %v393
        %v395 = vmul.f32 %v394, 0.6931472
        %v396 = vmul.f32 -0.5, %v392
        %v397 = vadd.f32 %v396, 1.0
        %v398 = vmul.f32 %v397, %v392
        %v399 = vand.u32 2147483647, %v392
        %vm400 = vcmp.lt.f32.partialorder %v399, 0.0004427343
        %v401 = vsel %vm400, %v398, %v395
        %v402 = vadd.f32 %v388, %v401
        %v403 = vsub.f32 %v402, 0.6931472
        %vm404 = vcmask 130048
        %405 = vst.msk [vmem:[%s372] sm:$0xff] %vm404, %v403
        %v406 = vld [vmem:[%s327] sm:$0xff]
        %s407 = scalar_lea.vmem %s327, 8 [#allocation5]
        %v408 = vld [vmem:[%s407] sm:$0xff]
        %s409 = scalar_lea.vmem %s327, 16 [#allocation5]
        %v410 = vld [vmem:[%s409] sm:$0xff]
        %v411 = vmul.f32 %v406, %v406
        %v412 = vmul.f32 %v408, %v408
        %v413 = vadd.f32 %v411, %v412
        %v414 = vmul.f32 %v410, %v410
        %v415 = vadd.f32 %v413, %v414
        %v416 = vadd.f32 %v415, 1e-09
        %v417 = vrsqrt.pop %v416
        %v418 = vmul.f32 %v416, %v417
        %vm419 = vcmp.eq.f32.partialorder %v416, inf
        %v420 = vsel %vm419, %v416, %v418
        %vm421 = vcmp.eq.f32.partialorder %v416, 0.0
        %v422 = vand.u32 %v416, 2147483648
        %v423 = vsel %vm421, %v422, %v420
        %v424 = vld [vmem:[%s3] sm:$0x1]
        %v426 = vlaneseq
        %v427 = vshrl.u32 %v426, 7
        %v428 = vsub.s32 0, %v427
        %v429 = vrot.slane %v424, %v428
        %v431 = vadd.f32 %v423, %v429
        %v432 = vmax.f32 %v431, 0.0
        %v433 = vand.u32 2147483647, %v431
        %v434 = vsub.f32 0.0, %v433
        %v435 = vmul.f32 %v434, 1.442695
        %v436 = vpow.pop %v435
        %v437 = vadd.f32 %v436, 1.0
        %v438 = vlog2.pop %v437
        %v439 = vmul.f32 %v438, 0.6931472
        %v440 = vmul.f32 -0.5, %v436
        %v441 = vadd.f32 %v440, 1.0
        %v442 = vmul.f32 %v441, %v436
        %v443 = vand.u32 2147483647, %v436
        %vm444 = vcmp.lt.f32.partialorder %v443, 0.0004427343
        %v445 = vsel %vm444, %v442, %v439
        %v446 = vadd.f32 %v432, %v445
        %v447 = vsub.f32 %v446, 0.6931472
        %v448 = vmul.f32 %v406, %v447
        %449 = vst.msk [vmem:[%s379] sm:$0xff] %vm404, %v448
        %v450 = vmul.f32 %v408, %v447
        %s451 = scalar_lea.vmem %s379, 8 [#allocation9]
        %452 = vst.msk [vmem:[%s451] sm:$0xff] %vm404, %v450
        %v453 = vmul.f32 %v410, %v447
        %s454 = scalar_lea.vmem %s379, 16 [#allocation9]
        %455 = vst.msk [vmem:[%s454] sm:$0xff] %vm404, %v453
        %v456 = vld [vmem:[%s336] sm:$0xff]
        %s457 = scalar_lea.vmem %s336, 8 [#allocation7]
        %v458 = vld [vmem:[%s457] sm:$0xff]
        %s459 = scalar_lea.vmem %s336, 16 [#allocation7]
        %v460 = vld [vmem:[%s459] sm:$0xff]
        %s461 = scalar_lea.vmem %s336, 24 [#allocation7]
        %v462 = vld [vmem:[%s461] sm:$0xff]
        %s463 = scalar_lea.vmem %s336, 32 [#allocation7]
        %v464 = vld [vmem:[%s463] sm:$0xff]
        %v465 = vmul.f32 %v456, %v456
        %v466 = vmul.f32 %v458, %v458
        %v467 = vadd.f32 %v465, %v466
        %v468 = vmul.f32 %v460, %v460
        %v469 = vadd.f32 %v467, %v468
        %v470 = vmul.f32 %v462, %v462
        %v471 = vadd.f32 %v469, %v470
        %v472 = vmul.f32 %v464, %v464
        %v473 = vadd.f32 %v471, %v472
        %v474 = vadd.f32 %v473, 1e-09
        %v475 = vrsqrt.pop %v474
        %v476 = vmul.f32 %v474, %v475
        %vm477 = vcmp.eq.f32.partialorder %v474, inf
        %v478 = vsel %vm477, %v474, %v476
        %vm479 = vcmp.eq.f32.partialorder %v474, 0.0
        %v480 = vand.u32 %v474, 2147483648
        %v481 = vsel %vm479, %v480, %v478
        %v482 = vld [vmem:[%s4] sm:$0x1]
        %v484 = vlaneseq
        %v485 = vshrl.u32 %v484, 7
        %v486 = vsub.s32 0, %v485
        %v487 = vrot.slane %v482, %v486
        %v489 = vadd.f32 %v481, %v487
        %v490 = vmax.f32 %v489, 0.0
        %v491 = vand.u32 2147483647, %v489
        %v492 = vsub.f32 0.0, %v491
        %v493 = vmul.f32 %v492, 1.442695
        %v494 = vpow.pop %v493
        %v495 = vadd.f32 %v494, 1.0
        %v496 = vlog2.pop %v495
        %v497 = vmul.f32 %v496, 0.6931472
        %v498 = vmul.f32 -0.5, %v494
        %v499 = vadd.f32 %v498, 1.0
        %v500 = vmul.f32 %v499, %v494
        %v501 = vand.u32 2147483647, %v494
        %vm502 = vcmp.lt.f32.partialorder %v501, 0.0004427343
        %v503 = vsel %vm502, %v500, %v497
        %v504 = vadd.f32 %v490, %v503
        %v505 = vsub.f32 %v504, 0.6931472
        %v506 = vmul.f32 %v456, %v505
        %507 = vst.msk [vmem:[%s386] sm:$0xff] %vm404, %v506
        %v508 = vmul.f32 %v458, %v505
        %s509 = scalar_lea.vmem %s386, 8 [#allocation11]
        %510 = vst.msk [vmem:[%s509] sm:$0xff] %vm404, %v508
        %v511 = vmul.f32 %v460, %v505
        %s512 = scalar_lea.vmem %s386, 16 [#allocation11]
        %513 = vst.msk [vmem:[%s512] sm:$0xff] %vm404, %v511
        %v514 = vmul.f32 %v462, %v505
        %s515 = scalar_lea.vmem %s386, 24 [#allocation11]
        %516 = vst.msk [vmem:[%s515] sm:$0xff] %vm404, %v514
        %v517 = vmul.f32 %v464, %v505
        %s518 = scalar_lea.vmem %s386, 32 [#allocation11]
        %519 = vst.msk [vmem:[%s518] sm:$0xff] %vm404, %v517
        %s520 = sand.u32 %s159, 1
        %s521 = scalar_lea.sflag [#allocation4], %s520
        %s522 = sand.u32 %s159, 1
        %s523 = smul.addr %s522, 8
        %s524 = scalar_lea.vmem [#allocation8], %s523
        %s525 = sand.u32 %s31, 1
        %s526 = scalar_lea.sflag [#allocation10], %s525
        %s527 = sand.u32 %s185, 1
        %s528 = smul.addr %s527, 24
        %s529 = scalar_lea.vmem [#allocation9], %s528
        %s530 = sand.u32 %s31, 1
        %s531 = scalar_lea.sflag [#allocation10], %s530
        %s532 = sand.u32 %s211, 1
        %s533 = smul.addr %s532, 40
        %s534 = scalar_lea.vmem [#allocation11], %s533
        // Predicated region
        $region53: #{nonlinearity_forward.1} parent=39 // pred_check
          %p535 = pneg %p169
        $region54: #{nonlinearity_forward.1} parent=39 // pred_check_branch
          %537 = sbr.rel (%p535) target = $region56
        $region55: #{nonlinearity_forward.1} parent=39 // pred_region
          %s539 = ssub.s32 128, 128
          %540 = vsyncadd %s521, %s539
          %s541 = smul.addr %s31, 128
          %s542 = scalar_lea.hbm %s5, %s541
          %s544 = sshll.u32 %s524, 4
          %s545 = int_to_ptr.vmem [resolvable:$true] %s544
          %547 = dma.vmem_to_hbm [thread:$0]  %s545, 128, %s542, %s521
        $region56: #{nonlinearity_forward.1} parent=39 // pred_fallthru
          _
        // Predicated region
        $region57: #{nonlinearity_forward.1} parent=39 // pred_check
          %p548 = pneg %p195
        $region58: #{nonlinearity_forward.1} parent=39 // pred_check_branch
          %550 = sbr.rel (%p548) target = $region60
        $region59: #{nonlinearity_forward.1} parent=39 // pred_region
          %s552 = ssub.s32 384, 384
          %553 = vsyncadd %s526, %s552
          %s554 = smul.addr %s31, 128
          %s555 = scalar_lea.hbm %s6, %s554
          %s556 = sshll.u32 %s529, 4
          %s557 = int_to_ptr.vmem [resolvable:$true] %s556
          %562 = dma.vmem_to_hbm [thread:$0]  %s557, 384, %s555, %s526, 128, 256, 8
        $region60: #{nonlinearity_forward.1} parent=39 // pred_fallthru
          _
        // Predicated region
        $region61: #{nonlinearity_forward.1} parent=39 // pred_check
          %p563 = pneg %p221
        $region62: #{nonlinearity_forward.1} parent=39 // pred_check_branch
          %565 = sbr.rel (%p563) target = $region64
        $region63: #{nonlinearity_forward.1} parent=39 // pred_region
          %s567 = ssub.s32 640, 640
          %568 = vsyncadd %s531, %s567
          %s569 = smul.addr %s31, 128
          %s570 = scalar_lea.hbm %s7, %s569
          %s571 = sshll.u32 %s534, 4
          %s572 = int_to_ptr.vmem [resolvable:$true] %s571
          %577 = dma.vmem_to_hbm [thread:$0]  %s572, 640, %s570, %s531, 128, 256, 8
        $region64: #{nonlinearity_forward.1} parent=39 // pred_fallthru
          _
      $region40: #{nonlinearity_forward.1} parent=5 // pred_fallthru
        _
      %p578 = scmp.le.s32.totalorder 2, %s26
      // Predicated region
      $region65: #{nonlinearity_forward.1} parent=5 // pred_check
        %p579 = pneg %p578
      $region66: #{nonlinearity_forward.1} parent=5 // pred_check_branch
        %581 = sbr.rel (%p579) target = $region68
      $region67: #{nonlinearity_forward.1} parent=5 // pred_region
        %s582 = ssub.s32 %s26, 2
        // Predicated region
        $region69: #{nonlinearity_forward.1} parent=67 // pred_check
          %p583 = pneg %p175
        $region70: #{nonlinearity_forward.1} parent=67 // pred_check_branch
          %585 = sbr.rel (%p583) target = $region72
        $region71: #{nonlinearity_forward.1} parent=67 // pred_region
          %s586 = sand.u32 %s160, 1
          %s587 = scalar_lea.sflag [#allocation4], %s586
          %s588 = sand.u32 %s160, 1
          %s589 = smul.addr %s588, 8
          %s590 = scalar_lea.vmem [#allocation8], %s589
          %591 = dma.done %s587, 128
        $region72: #{nonlinearity_forward.1} parent=67 // pred_fallthru
          _
        // Predicated region
        $region73: #{nonlinearity_forward.1} parent=67 // pred_check
          %p592 = pneg %p201
        $region74: #{nonlinearity_forward.1} parent=67 // pred_check_branch
          %594 = sbr.rel (%p592) target = $region76
        $region75: #{nonlinearity_forward.1} parent=67 // pred_region
          %s595 = sand.u32 %s32, 1
          %s596 = scalar_lea.sflag [#allocation10], %s595
          %s597 = sand.u32 %s186, 1
          %s598 = smul.addr %s597, 24
          %s599 = scalar_lea.vmem [#allocation9], %s598
          %600 = dma.done %s596, 384
        $region76: #{nonlinearity_forward.1} parent=67 // pred_fallthru
          _
        // Predicated region
        $region77: #{nonlinearity_forward.1} parent=67 // pred_check
          %p601 = pneg %p227
        $region78: #{nonlinearity_forward.1} parent=67 // pred_check_branch
          %603 = sbr.rel (%p601) target = $region80
        $region79: #{nonlinearity_forward.1} parent=67 // pred_region
          %s604 = sand.u32 %s32, 1
          %s605 = scalar_lea.sflag [#allocation10], %s604
          %s606 = sand.u32 %s212, 1
          %s607 = smul.addr %s606, 40
          %s608 = scalar_lea.vmem [#allocation11], %s607
          %609 = dma.done %s605, 640
        $region80: #{nonlinearity_forward.1} parent=67 // pred_fallthru
          _
      $region68: #{nonlinearity_forward.1} parent=5 // pred_fallthru
        _
    $region6: #{nonlinearity_forward.1} parent=1 // loop_footer
      %s30 = sadd.s32 1, %s26
    $region7: #{nonlinearity_forward.1} parent=1 // loop_footer_branch
      %25 = sbr.rel target = $region3
    $region8: #{nonlinearity_forward.1} parent=1 // loop_exit
      _
    %610 = vsyncpa [#allocation3], 1
    %s611 = scalar_lea.sflag [#allocation3], 1
    %612 = vsyncpa %s611, 1
    %613 = vsyncpa [#allocation6], 1
    %s614 = scalar_lea.sflag [#allocation6], 1
    %615 = vsyncpa %s614, 1
    %616 = vsyncpa [#allocation4], 1
    %s617 = scalar_lea.sflag [#allocation4], 1
    %618 = vsyncpa %s617, 1
    %619 = vsyncpa [#allocation10], 1
    %s620 = scalar_lea.sflag [#allocation10], 1
    %621 = vsyncpa %s620, 1

</llo_original>
